<compile_context>
chip_gen: v6e
topology: v6e:2x2x1
jax: 0.10.0
libtpu: 0.0.40
codegen_flags: <defaults>
</compile_context>

<pallas_src>
import math

import jax
import jax.numpy as jnp
from jax.experimental import pallas as pl
from jax.experimental.pallas import tpu as pltpu

HIDDEN = 256            # per-branch hidden width (PyTorch module uses 256)
OUT_LANES = 128         # lane-dense output slab width (q1 -> lane 0, q2 -> lane 1)
_SUBLANE = 16           # row quantum keeping bf16 (16,128) / f32 (8,128) tiles happy
_SPLIT_THRESHOLD = 256  # below this many (padded) rows, use a single tile


def _round_up(x, m):
    return ((x + m - 1) // m) * m


def _tile_plan(B, block_b):
    """Return (tile_rows, padded_batch); grid = padded_batch // tile_rows."""
    Bq = _round_up(B, _SUBLANE)
    if Bq < _SPLIT_THRESHOLD:
        # Tiny batch: one tile; splitting only adds ~0.35 us/step overhead.
        return Bq, Bq
    # At least 2 grid steps so the batch can shard across the two TensorCores
    # on v7x; cap the tile at block_b rows (overhead amortization vs VMEM —
    # TB=1024 keeps everything well under the v5e 16 MiB scoped-VMEM default).
    n_tiles = max(2, -(-Bq // block_b))
    tb = _round_up(-(-Bq // n_tiles), _SUBLANE)
    return tb, n_tiles * tb


def _critic_kernel(state_ref, action_ref, w1s_ref, w1a_ref, b_ref,
                   w25_ref, wout_ref, out_ref):
    f32 = jnp.float32
    bf16 = jnp.bfloat16

    b = b_ref[...]                                   # (3, 512) f32
    s = state_ref[...].astype(bf16)                  # (TB, sd)
    a = action_ref[...].astype(bf16)                 # (TB, ad)

    # ---- Layer 1: fused [Q1 || Q2] 512-wide, split-K over state/action ----
    # Split-K keeps the wrapper-side concatenate (extra HBM round trip) out.
    # TODO(synk): could collapse to one K=sd+ad dot via an in-kernel lane
    # concat, but the non-tile-aligned minor-dim concat is riskier than the
    # tiny MXU saving is worth.
    z1 = (jnp.dot(s, w1s_ref[...], preferred_element_type=f32)
          + jnp.dot(a, w1a_ref[...], preferred_element_type=f32)
          + b[0:1, :])
    z1 = jnp.maximum(z1, 0.0)                        # (TB, 512) f32
    h = z1[:, :HIDDEN].astype(bf16)                  # Q1 hidden
    g = z1[:, HIDDEN:].astype(bf16)                  # Q2 hidden

    # ---- Layer 2: packed weights, f32 bias + ReLU (v5e-safe elementwise) ----
    h2 = jnp.maximum(
        jnp.dot(h, w25_ref[0], preferred_element_type=f32) + b[1:2, :HIDDEN], 0.0)
    g2 = jnp.maximum(
        jnp.dot(g, w25_ref[1], preferred_element_type=f32) + b[1:2, HIDDEN:], 0.0)

    # ---- Output heads fused into ONE K=512 matmul ----
    # h2||g2 lane-concat is cut at lane 256 (tile aligned, no cross-lane
    # shuffle). wout: w3 in rows 0:256 / lane 0, w6 in rows 256:512 / lane 1.
    # b3/b6 live in bias row 2 (lanes 0/1). Store a lane-dense bf16 slab.
    hg = jnp.concatenate([h2, g2], axis=1).astype(bf16)              # (TB, 512)
    out = (jnp.dot(hg, wout_ref[...], preferred_element_type=f32)
           + b[2:3, :OUT_LANES])                                     # (TB, 128) f32
    out_ref[...] = out.astype(out_ref.dtype)


def pack_critic_params(params, state_dim):
    """One-time packing of the PyTorch-style parameter dict into fused operands.

    Call this ONCE (at init / after each optimizer step), not per forward.
    """
    w14 = jnp.concatenate([params["w1"], params["w4"]], axis=1)      # (in, 512)
    w1s = w14[:state_dim].astype(jnp.bfloat16)                       # (sd, 512)
    w1a = w14[state_dim:].astype(jnp.bfloat16)                       # (ad, 512)

    b_l1 = jnp.concatenate([params["b1"], params["b4"]], axis=1)     # (1, 512)
    b_l2 = jnp.concatenate([params["b2"], params["b5"]], axis=1)     # (1, 512)
    b_out = jnp.zeros((1, 2 * HIDDEN), jnp.float32)
    b_out = b_out.at[0, 0].set(params["b3"][0, 0])                   # q1 bias -> lane 0
    b_out = b_out.at[0, 1].set(params["b6"][0, 0])                   # q2 bias -> lane 1
    biases = jnp.concatenate([b_l1, b_l2, b_out], axis=0)            # (3, 512) f32

    w25 = jnp.stack([params["w2"], params["w5"]], axis=0).astype(jnp.bfloat16)  # (2,256,256)

    # Fused head weight: (512, 128) with w3 in rows 0:256 / col 0, w6 in
    # rows 256:512 / col 1.
    wout = jnp.zeros((2 * HIDDEN, OUT_LANES), jnp.float32)
    wout = wout.at[:HIDDEN, 0].set(params["w3"][:, 0])
    wout = wout.at[HIDDEN:, 1].set(params["w6"][:, 0])
    wout = wout.astype(jnp.bfloat16)                                 # (512, 128)

    return dict(w1s=w1s, w1a=w1a, biases=biases, w25=w25, wout=wout)


def critic_forward(state, action, packed, *, block_b=1024):
    """Equivalent of Critic.forward(state, action) -> (q1, q2).

    `packed` is the output of pack_critic_params (hoisted out of the hot path).
    """
    B, state_dim = state.shape
    action_dim = action.shape[1]

    TB, B_pad = _tile_plan(B, block_b)
    if B_pad != B:
        pad = B_pad - B
        state = jnp.pad(state, ((0, pad), (0, 0)))
        action = jnp.pad(action, ((0, pad), (0, 0)))

    out = pl.pallas_call(
        _critic_kernel,
        out_shape=jax.ShapeDtypeStruct((B_pad, OUT_LANES), jnp.bfloat16),
        grid=(B_pad // TB,),
        in_specs=[
            pl.BlockSpec((TB, state_dim), lambda i: (i, 0)),
            pl.BlockSpec((TB, action_dim), lambda i: (i, 0)),
            pl.BlockSpec((state_dim, 2 * HIDDEN), lambda i: (0, 0)),
            pl.BlockSpec((action_dim, 2 * HIDDEN), lambda i: (0, 0)),
            pl.BlockSpec((3, 2 * HIDDEN), lambda i: (0, 0)),
            pl.BlockSpec((2, HIDDEN, HIDDEN), lambda i: (0, 0, 0)),
            pl.BlockSpec((2 * HIDDEN, OUT_LANES), lambda i: (0, 0)),
        ],
        out_specs=pl.BlockSpec((TB, OUT_LANES), lambda i: (i, 0)),
        compiler_params=pltpu.CompilerParams(
            dimension_semantics=("parallel",),
            vmem_limit_bytes=32 * 1024 * 1024),
    )(state, action, packed["w1s"], packed["w1a"], packed["biases"],
      packed["w25"], packed["wout"])

    # q1 / q2 live in lanes 0 / 1 (biases already folded in-kernel).
    q1 = out[:B, 0:1].astype(jnp.float32)
    q2 = out[:B, 1:2].astype(jnp.float32)
    return q1, q2


def init_critic_params(key, state_dim, action_dim, hidden=HIDDEN):
    """Deterministic PyTorch-style (uniform +/- 1/sqrt(fan_in)) init.

    Weights stored [in_features, out_features]; biases [1, out_features].
    """
    in_dim = state_dim + action_dim

    def linear(key, fan_in, fan_out):
        kw, kb = jax.random.split(key)
        bound = 1.0 / math.sqrt(fan_in)
        w = jax.random.uniform(kw, (fan_in, fan_out), jnp.float32, -bound, bound)
        b = jax.random.uniform(kb, (1, fan_out), jnp.float32, -bound, bound)
        return w, b

    keys = jax.random.split(key, 6)
    w1, b1 = linear(keys[0], in_dim, hidden)
    w2, b2 = linear(keys[1], hidden, hidden)
    w3, b3 = linear(keys[2], hidden, 1)
    w4, b4 = linear(keys[3], in_dim, hidden)
    w5, b5 = linear(keys[4], hidden, hidden)
    w6, b6 = linear(keys[5], hidden, 1)
    return dict(w1=w1, b1=b1, w2=w2, b2=b2, w3=w3, b3=b3,
                w4=w4, b4=b4, w5=w5, b5=b5, w6=w6, b6=b6)


def _reference_forward(state, action, p):
    sa = jnp.concatenate([state, action], axis=1)
    h = jnp.maximum(sa @ p["w1"] + p["b1"], 0.0)
    h = jnp.maximum(h @ p["w2"] + p["b2"], 0.0)
    q1 = h @ p["w3"] + p["b3"]
    g = jnp.maximum(sa @ p["w4"] + p["b4"], 0.0)
    g = jnp.maximum(g @ p["w5"] + p["b5"], 0.0)
    q2 = g @ p["w6"] + p["b6"]
    return q1, q2


if __name__ == "__main__":
    key = jax.random.PRNGKey(0)
    k_state, k_action, k_params, k_state2, k_action2 = jax.random.split(key, 5)

    state_dim, action_dim = 12, 4
    params = init_critic_params(k_params, state_dim, action_dim)
    packed = pack_critic_params(params, state_dim)   # packed ONCE (hot-path hoist)

    # --- small batch (single tile, grid=1) ---
    B = 8
    state = jax.random.normal(k_state, (B, state_dim), jnp.float32)
    action = jax.random.normal(k_action, (B, action_dim), jnp.float32)
    q1, q2 = critic_forward(state, action, packed)
    jax.block_until_ready((q1, q2))

    r1, r2 = _reference_forward(state, action, params)
    assert q1.shape == (B, 1) and q2.shape == (B, 1)
    # Reference is full f32; kernel uses bf16 MXU operands w/ f32 accumulation
    # and a bf16 output slab, so tolerance is loosened accordingly.
    assert jnp.allclose(q1, r1, atol=2e-2, rtol=2e-2)
    assert jnp.allclose(q2, r2, atol=2e-2, rtol=2e-2)

    # --- typical RL batch (multi-tile path, grid>=2) ---
    B2 = 256
    state2 = jax.random.normal(k_state2, (B2, state_dim), jnp.float32)
    action2 = jax.random.normal(k_action2, (B2, action_dim), jnp.float32)
    q1b, q2b = critic_forward(state2, action2, packed)
    jax.block_until_ready((q1b, q2b))

    r1b, r2b = _reference_forward(state2, action2, params)
    assert q1b.shape == (B2, 1) and q2b.shape == (B2, 1)
    assert jnp.allclose(q1b, r1b, atol=2e-2, rtol=2e-2)
    assert jnp.allclose(q2b, r2b, atol=2e-2, rtol=2e-2)

    print("KERNEL_OK")
</pallas_src>

<mosaic_0001>
module attributes {stable_mosaic.version = 11 : i64} {
  func.func @_critic_kernel(%arg0: i32, %arg1: memref<16x12xf32, #tpu.memory_space<vmem>>, %arg2: memref<16x4xf32, #tpu.memory_space<vmem>>, %arg3: memref<12x512xbf16, #tpu.memory_space<vmem>>, %arg4: memref<4x512xbf16, #tpu.memory_space<vmem>>, %arg5: memref<3x512xf32, #tpu.memory_space<vmem>>, %arg6: memref<2x256x256xbf16, #tpu.memory_space<vmem>>, %arg7: memref<512x128xbf16, #tpu.memory_space<vmem>>, %arg8: memref<16x128xbf16, #tpu.memory_space<vmem>>) attributes {dimension_semantics = [#tpu.dimension_semantics<parallel>], iteration_bounds = array<i64: 1>, scalar_prefetch = 0 : i64, scratch_operands = 0 : i64, tpu.core_type = #tpu.core_type<tc>, window_params = [{transform_indices = @transform_0, window_bounds = array<i64: 16, 12>}, {transform_indices = @transform_1, window_bounds = array<i64: 16, 4>}, {pipeline_mode = #tpu.pipeline_mode<synchronous>, transform_indices = @transform_2, window_bounds = array<i64: 12, 512>}, {pipeline_mode = #tpu.pipeline_mode<synchronous>, transform_indices = @transform_3, window_bounds = array<i64: 4, 512>}, {pipeline_mode = #tpu.pipeline_mode<synchronous>, transform_indices = @transform_4, window_bounds = array<i64: 3, 512>}, {pipeline_mode = #tpu.pipeline_mode<synchronous>, transform_indices = @transform_5, window_bounds = array<i64: 2, 256, 256>}, {pipeline_mode = #tpu.pipeline_mode<synchronous>, transform_indices = @transform_6, window_bounds = array<i64: 512, 128>}, {transform_indices = @transform_7, window_bounds = array<i64: 16, 128>}]} {
    %c0 = arith.constant 0 : index
    %c0_0 = arith.constant 0 : index
    %0 = vector.load %arg5[%c0, %c0_0] : memref<3x512xf32, #tpu.memory_space<vmem>>, vector<3x512xf32>
    %c0_1 = arith.constant 0 : index
    %c0_2 = arith.constant 0 : index
    %1 = vector.load %arg1[%c0_1, %c0_2] : memref<16x12xf32, #tpu.memory_space<vmem>>, vector<16x12xf32>
    %2 = arith.truncf %1 : vector<16x12xf32> to vector<16x12xbf16>
    %c0_3 = arith.constant 0 : index
    %c0_4 = arith.constant 0 : index
    %3 = vector.load %arg2[%c0_3, %c0_4] : memref<16x4xf32, #tpu.memory_space<vmem>>, vector<16x4xf32>
    %4 = arith.truncf %3 : vector<16x4xf32> to vector<16x4xbf16>
    %c0_5 = arith.constant 0 : index
    %c0_6 = arith.constant 0 : index
    %5 = vector.load %arg3[%c0_5, %c0_6] : memref<12x512xbf16, #tpu.memory_space<vmem>>, vector<12x512xbf16>
    %cst = arith.constant dense<0.000000e+00> : vector<16x512xf32>
    %6 = tpu.matmul %2, %5, %cst {dimension_numbers = #tpu.dot_dimension_numbers<[1], [0], [0], [1], [0, 0, 1, 1], [], []>} : vector<16x12xbf16>, vector<12x512xbf16>, vector<16x512xf32> -> vector<16x512xf32>
    %c0_7 = arith.constant 0 : index
    %c0_8 = arith.constant 0 : index
    %7 = vector.load %arg4[%c0_7, %c0_8] : memref<4x512xbf16, #tpu.memory_space<vmem>>, vector<4x512xbf16>
    %cst_9 = arith.constant dense<0.000000e+00> : vector<16x512xf32>
    %8 = tpu.matmul %4, %7, %cst_9 {dimension_numbers = #tpu.dot_dimension_numbers<[1], [0], [0], [1], [0, 0, 1, 1], [], []>} : vector<16x4xbf16>, vector<4x512xbf16>, vector<16x512xf32> -> vector<16x512xf32>
    %9 = arith.addf %6, %8 : vector<16x512xf32>
    %10 = vector.extract_strided_slice %0 {offsets = [0, 0], sizes = [1, 512], strides = [1, 1]} : vector<3x512xf32> to vector<1x512xf32>
    %11 = vector.broadcast %10 : vector<1x512xf32> to vector<16x512xf32>
    %12 = arith.addf %9, %11 : vector<16x512xf32>
    %cst_10 = arith.constant 0.000000e+00 : f32
    %13 = vector.broadcast %cst_10 : f32 to vector<16x512xf32>
    %14 = arith.maximumf %12, %13 : vector<16x512xf32>
    %15 = vector.extract_strided_slice %14 {offsets = [0, 0], sizes = [16, 256], strides = [1, 1]} : vector<16x512xf32> to vector<16x256xf32>
    %16 = arith.truncf %15 : vector<16x256xf32> to vector<16x256xbf16>
    %17 = vector.extract_strided_slice %14 {offsets = [0, 256], sizes = [16, 256], strides = [1, 1]} : vector<16x512xf32> to vector<16x256xf32>
    %18 = arith.truncf %17 : vector<16x256xf32> to vector<16x256xbf16>
    %c0_11 = arith.constant 0 : index
    %c0_12 = arith.constant 0 : index
    %c0_13 = arith.constant 0 : index
    %19 = vector.load %arg6[%c0_11, %c0_12, %c0_13] : memref<2x256x256xbf16, #tpu.memory_space<vmem>>, vector<1x256x256xbf16>
    %20 = vector.shape_cast %19 : vector<1x256x256xbf16> to vector<256x256xbf16>
    %cst_14 = arith.constant dense<0.000000e+00> : vector<16x256xf32>
    %21 = tpu.matmul %16, %20, %cst_14 {dimension_numbers = #tpu.dot_dimension_numbers<[1], [0], [0], [1], [0, 0, 1, 1], [], []>} : vector<16x256xbf16>, vector<256x256xbf16>, vector<16x256xf32> -> vector<16x256xf32>
    %22 = vector.extract_strided_slice %0 {offsets = [1, 0], sizes = [1, 256], strides = [1, 1]} : vector<3x512xf32> to vector<1x256xf32>
    %23 = vector.broadcast %22 : vector<1x256xf32> to vector<16x256xf32>
    %24 = arith.addf %21, %23 : vector<16x256xf32>
    %cst_15 = arith.constant 0.000000e+00 : f32
    %25 = vector.broadcast %cst_15 : f32 to vector<16x256xf32>
    %26 = arith.maximumf %24, %25 : vector<16x256xf32>
    %c1 = arith.constant 1 : index
    %c0_16 = arith.constant 0 : index
    %c0_17 = arith.constant 0 : index
    %27 = vector.load %arg6[%c1, %c0_16, %c0_17] : memref<2x256x256xbf16, #tpu.memory_space<vmem>>, vector<1x256x256xbf16>
    %28 = vector.shape_cast %27 : vector<1x256x256xbf16> to vector<256x256xbf16>
    %cst_18 = arith.constant dense<0.000000e+00> : vector<16x256xf32>
    %29 = tpu.matmul %18, %28, %cst_18 {dimension_numbers = #tpu.dot_dimension_numbers<[1], [0], [0], [1], [0, 0, 1, 1], [], []>} : vector<16x256xbf16>, vector<256x256xbf16>, vector<16x256xf32> -> vector<16x256xf32>
    %30 = vector.extract_strided_slice %0 {offsets = [1, 256], sizes = [1, 256], strides = [1, 1]} : vector<3x512xf32> to vector<1x256xf32>
    %31 = vector.broadcast %30 : vector<1x256xf32> to vector<16x256xf32>
    %32 = arith.addf %29, %31 : vector<16x256xf32>
    %cst_19 = arith.constant 0.000000e+00 : f32
    %33 = vector.broadcast %cst_19 : f32 to vector<16x256xf32>
    %34 = arith.maximumf %32, %33 : vector<16x256xf32>
    %35 = tpu.concatenate %26, %34 in 1 : vector<16x256xf32>, vector<16x256xf32> -> vector<16x512xf32>
    %36 = arith.truncf %35 : vector<16x512xf32> to vector<16x512xbf16>
    %c0_20 = arith.constant 0 : index
    %c0_21 = arith.constant 0 : index
    %37 = vector.load %arg7[%c0_20, %c0_21] : memref<512x128xbf16, #tpu.memory_space<vmem>>, vector<512x128xbf16>
    %cst_22 = arith.constant dense<0.000000e+00> : vector<16x128xf32>
    %38 = tpu.matmul %36, %37, %cst_22 {dimension_numbers = #tpu.dot_dimension_numbers<[1], [0], [0], [1], [0, 0, 1, 1], [], []>} : vector<16x512xbf16>, vector<512x128xbf16>, vector<16x128xf32> -> vector<16x128xf32>
    %39 = vector.extract_strided_slice %0 {offsets = [2, 0], sizes = [1, 128], strides = [1, 1]} : vector<3x512xf32> to vector<1x128xf32>
    %40 = vector.broadcast %39 : vector<1x128xf32> to vector<16x128xf32>
    %41 = arith.addf %38, %40 : vector<16x128xf32>
    %42 = arith.truncf %41 : vector<16x128xf32> to vector<16x128xbf16>
    %c0_23 = arith.constant 0 : index
    %c0_24 = arith.constant 0 : index
    %43 = vector.load %arg8[%c0_23, %c0_24] : memref<16x128xbf16, #tpu.memory_space<vmem>>, vector<16x128xbf16>
    tpu.vector_store %arg8[%c0_23, %c0_24], %42 {strides = array<i32>} : memref<16x128xbf16, #tpu.memory_space<vmem>>, vector<16x128xbf16>,
    return
  }
  func.func @transform_0(%arg0: i32) -> (i32, i32) {
    %c0_i32 = arith.constant 0 : i32
    %c0_i32_0 = arith.constant 0 : i32
    return %arg0, %c0_i32 : i32, i32
  }
  func.func @transform_1(%arg0: i32) -> (i32, i32) {
    %c0_i32 = arith.constant 0 : i32
    %c0_i32_0 = arith.constant 0 : i32
    return %arg0, %c0_i32 : i32, i32
  }
  func.func @transform_2(%arg0: i32) -> (i32, i32) {
    %c0_i32 = arith.constant 0 : i32
    %c0_i32_0 = arith.constant 0 : i32
    %c0_i32_1 = arith.constant 0 : i32
    return %c0_i32, %c0_i32_0 : i32, i32
  }
  func.func @transform_3(%arg0: i32) -> (i32, i32) {
    %c0_i32 = arith.constant 0 : i32
    %c0_i32_0 = arith.constant 0 : i32
    %c0_i32_1 = arith.constant 0 : i32
    return %c0_i32, %c0_i32_0 : i32, i32
  }
  func.func @transform_4(%arg0: i32) -> (i32, i32) {
    %c0_i32 = arith.constant 0 : i32
    %c0_i32_0 = arith.constant 0 : i32
    %c0_i32_1 = arith.constant 0 : i32
    return %c0_i32, %c0_i32_0 : i32, i32
  }
  func.func @transform_5(%arg0: i32) -> (i32, i32, i32) {
    %c0_i32 = arith.constant 0 : i32
    %c0_i32_0 = arith.constant 0 : i32
    %c0_i32_1 = arith.constant 0 : i32
    %c0_i32_2 = arith.constant 0 : i32
    return %c0_i32, %c0_i32_0, %c0_i32_1 : i32, i32, i32
  }
  func.func @transform_6(%arg0: i32) -> (i32, i32) {
    %c0_i32 = arith.constant 0 : i32
    %c0_i32_0 = arith.constant 0 : i32
    %c0_i32_1 = arith.constant 0 : i32
    return %c0_i32, %c0_i32_0 : i32, i32
  }
  func.func @transform_7(%arg0: i32) -> (i32, i32) {
    %c0_i32 = arith.constant 0 : i32
    %c0_i32_0 = arith.constant 0 : i32
    return %arg0, %c0_i32 : i32, i32
  }
}

</mosaic_0001>

<llo_original>
// kernel: tpu_custom_call.1
$region0: #{tpu_custom_call.1}
  #allocation0 [shape = 'u32[]', space=smem, size = 0x4, offset = 0x4, fixed_abs, tag = 'smem constant byte address 0x4 - core index']
  #allocation1 [shape = 'u32[144,128]{1,0:T(1,128)}', space=vmem, size = 0x12000, scoped, tag = 'internal scratch']
  %s0 = inlined_call_operand.vmem [shape: f32[16,12], index: 0, kind: input, shape index: {}]
  %s1 = inlined_call_operand.vmem [shape: f32[16,4], index: 1, kind: input, shape index: {}]
  %s2 = inlined_call_operand.hbm [shape: bf16[12,512], index: 2, kind: input, shape index: {}]
  %s3 = inlined_call_operand.vmem [shape: bf16[4,512], index: 3, kind: input, shape index: {}]
  %s4 = inlined_call_operand.hbm [shape: f32[3,512], index: 4, kind: input, shape index: {}]
  %s5 = inlined_call_operand.hbm [shape: bf16[2,256,256], index: 5, kind: input, shape index: {}]
  %s6 = inlined_call_operand.hbm [shape: bf16[512,128], index: 6, kind: input, shape index: {}]
  %s7 = inlined_call_operand.hbm [shape: bf16[16,128], index: 7, kind: output, shape index: {}]
  %s8 = sld [smem:[#allocation0]]
  $region54: #{tpu_custom_call.1} parent=0
    _
  %s10 = ssub.s32 1, %s8
  %s11 = scalar_select 0, %s10, %s8
  $region1: #{tpu_custom_call.1} parent=0
    #allocation2 [shape = 'u8[16384]{0}', space=vmem, size = 0x4000, scoped, tag = 'input window, operand 2, single buffered']
    #allocation3 [shape = 's32[1]{0}', space=sflag, size = 0x4, scoped, tag = 'scoped memory for tpu_custom_call.1']
    #allocation4 [shape = 's32[1]{0}', space=sflag, size = 0x4, scoped, tag = 'scoped memory for tpu_custom_call.1']
    #allocation5 [shape = 'u8[8192]{0}', space=vmem, size = 0x2000, scoped, tag = 'input window, operand 4, single buffered']
    #allocation6 [shape = 's32[1]{0}', space=sflag, size = 0x4, scoped, tag = 'scoped memory for tpu_custom_call.1']
    #allocation7 [shape = 'u8[262144]{0}', space=vmem, size = 0x40000, scoped, tag = 'input window, operand 5, single buffered']
    #allocation8 [shape = 'u8[131072]{0}', space=vmem, size = 0x20000, scoped, tag = 'input window, operand 6, single buffered']
    #allocation9 [shape = 's32[1]{0}', space=sflag, size = 0x4, scoped, tag = 'scoped memory for tpu_custom_call.1']
    #allocation10 [shape = 'u8[4096]{0}', space=vmem, size = 0x1000, scoped, tag = 'output window, operand 0, single buffered']
    %12 = vsyncpa [#allocation3], 0
    %13 = vsyncpa [#allocation6], 0
    %14 = vsyncpa [#allocation9], 0
    %15 = vsyncpa [#allocation4], 0
    // Predicated region
    $region2: #{tpu_custom_call.1} parent=1 // pred_check
      _
    $region3: #{tpu_custom_call.1} parent=1 // pred_check_branch
      %17 = sbr.rel (0) target = $region5
    $region4: #{tpu_custom_call.1} parent=1 // pred_region
      _
    $region5: #{tpu_custom_call.1} parent=1 // pred_fallthru
      _
    // Predicated region
    $region6: #{tpu_custom_call.1} parent=1 // pred_check
      _
    $region7: #{tpu_custom_call.1} parent=1 // pred_check_branch
      %19 = sbr.rel (0) target = $region9
    $region8: #{tpu_custom_call.1} parent=1 // pred_region
      _
    $region9: #{tpu_custom_call.1} parent=1 // pred_fallthru
      _
    // Predicated region
    $region10: #{tpu_custom_call.1} parent=1 // pred_check
      _
    $region11: #{tpu_custom_call.1} parent=1 // pred_check_branch
      %21 = sbr.rel (0) target = $region13
    $region12: #{tpu_custom_call.1} parent=1 // pred_region
      %s23 = ssub.s32 512, 512
      %24 = vsyncadd [#allocation3], %s23
      %s25 = sshll.u32 [#allocation2], 4
      %s26 = int_to_ptr.vmem [resolvable:$true] %s25
      %31 = dma.hbm_to_vmem [thread:$0]  %s2, 512, %s26, [#allocation3], 256, 256, 16
    $region13: #{tpu_custom_call.1} parent=1 // pred_fallthru
      _
    // Predicated region
    $region14: #{tpu_custom_call.1} parent=1 // pred_check
      _
    $region15: #{tpu_custom_call.1} parent=1 // pred_check_branch
      %33 = sbr.rel (0) target = $region17
    $region16: #{tpu_custom_call.1} parent=1 // pred_region
      _
    $region17: #{tpu_custom_call.1} parent=1 // pred_fallthru
      _
    // Predicated region
    $region18: #{tpu_custom_call.1} parent=1 // pred_check
      _
    $region19: #{tpu_custom_call.1} parent=1 // pred_check_branch
      %35 = sbr.rel (0) target = $region21
    $region20: #{tpu_custom_call.1} parent=1 // pred_region
      %s37 = ssub.s32 256, 256
      %38 = vsyncadd [#allocation6], %s37
      %s40 = sshll.u32 [#allocation5], 4
      %s41 = int_to_ptr.vmem [resolvable:$true] %s40
      %43 = dma.hbm_to_vmem [thread:$0]  %s4, 256, %s41, [#allocation6]
    $region21: #{tpu_custom_call.1} parent=1 // pred_fallthru
      _
    // Predicated region
    $region22: #{tpu_custom_call.1} parent=1 // pred_check
      _
    $region23: #{tpu_custom_call.1} parent=1 // pred_check_branch
      %45 = sbr.rel (0) target = $region25
    $region24: #{tpu_custom_call.1} parent=1 // pred_region
      %s47 = ssub.s32 8192, 8192
      %48 = vsyncadd [#allocation6], %s47
      %s49 = sshll.u32 [#allocation7], 4
      %s50 = int_to_ptr.vmem [resolvable:$true] %s49
      %55 = dma.hbm_to_vmem [thread:$0]  %s5, 8192, %s50, [#allocation6], 128, 128, 8
    $region25: #{tpu_custom_call.1} parent=1 // pred_fallthru
      _
    // Predicated region
    $region26: #{tpu_custom_call.1} parent=1 // pred_check
      _
    $region27: #{tpu_custom_call.1} parent=1 // pred_check_branch
      %57 = sbr.rel (0) target = $region29
    $region28: #{tpu_custom_call.1} parent=1 // pred_region
      %s59 = ssub.s32 4096, 4096
      %60 = vsyncadd [#allocation9], %s59
      %s61 = sshll.u32 [#allocation8], 4
      %s62 = int_to_ptr.vmem [resolvable:$true] %s61
      %67 = dma.hbm_to_vmem [thread:$0]  %s6, 4096, %s62, [#allocation9], 64, 64, 4
    $region29: #{tpu_custom_call.1} parent=1 // pred_fallthru
      _
    // Predicated region
    $region30: #{tpu_custom_call.1} parent=1 // pred_check
      _
    $region31: #{tpu_custom_call.1} parent=1 // pred_check_branch
      %69 = sbr.rel (0) target = $region33
    $region32: #{tpu_custom_call.1} parent=1 // pred_region
      %70 = dma.done [#allocation3], 512
    $region33: #{tpu_custom_call.1} parent=1 // pred_fallthru
      _
    // Predicated region
    $region34: #{tpu_custom_call.1} parent=1 // pred_check
      _
    $region35: #{tpu_custom_call.1} parent=1 // pred_check_branch
      %72 = sbr.rel (0) target = $region37
    $region36: #{tpu_custom_call.1} parent=1 // pred_region
      %73 = dma.done [#allocation6], 256
    $region37: #{tpu_custom_call.1} parent=1 // pred_fallthru
      _
    // Predicated region
    $region38: #{tpu_custom_call.1} parent=1 // pred_check
      _
    $region39: #{tpu_custom_call.1} parent=1 // pred_check_branch
      %75 = sbr.rel (0) target = $region41
    $region40: #{tpu_custom_call.1} parent=1 // pred_region
      %76 = dma.done [#allocation6], 8192
    $region41: #{tpu_custom_call.1} parent=1 // pred_fallthru
      _
    // Predicated region
    $region42: #{tpu_custom_call.1} parent=1 // pred_check
      _
    $region43: #{tpu_custom_call.1} parent=1 // pred_check_branch
      %78 = sbr.rel (0) target = $region45
    $region44: #{tpu_custom_call.1} parent=1 // pred_region
      %79 = dma.done [#allocation9], 4096
    $region45: #{tpu_custom_call.1} parent=1 // pred_fallthru
      _
    %v81 = vld [vmem:[#allocation5] sm:$0x77]
    %v82 = vld [vmem:[#allocation5 + $0x8] sm:$0x77]
    %v83 = vld [vmem:[%s0] sm:$0xff]
    %v84 = vld [vmem:[%s0 + $0x8] sm:$0xff]
    %v85 = vpack.c.bf16 %v84, %v83
    %v86 = vld [vmem:[%s1] sm:$0xff]
    %v87 = vld [vmem:[%s1 + $0x8] sm:$0xff]
    %v88 = vpack.c.bf16 %v87, %v86
    %v89 = vld [vmem:[#allocation2] sm:$0xff]
    %v90 = vld [vmem:[#allocation2 + $0x8] sm:$0xff]
    %v91 = vld [vmem:[#allocation2 + $0x10] sm:$0x33]
    %v92 = vld [vmem:[#allocation2 + $0x18] sm:$0x33]
    %v93 = vld [vmem:[%s3] sm:$0xff]
    %v95 = vcombine.high %v93, %v93
    %v97 = vunpack.c.l.s4 1983009808
    %v98 = vunpack.c.0.s8 %v97
    %v99 = vlaneseq
    %v100 = vshrl.u32 %v99, 7
    %v101 = vsub.s32 %v98, %v100
    %v102 = vrot.slane %v93, %v101
    %v104 = vunpack.c.l.s4 1983009808
    %v105 = vunpack.c.0.s8 %v104
    %v106 = vlaneseq
    %v107 = vshrl.u32 %v106, 7
    %v108 = vsub.s32 %v105, %v107
    %v109 = vrot.slane %v95, %v108
    %v110 = vcombine.high %v102, %v102
    %v111 = vcombine.high %v109, %v109
    %vm112 = vcmask 31744
    %v114 = vsel %vm112, %v88, 0
    %vm116 = vcmask 1041408
    %v118 = vsel %vm116, %v102, 0
    %v121 = vsel %vm116, %v110, 0
    %v124 = vsel %vm116, %v109, 0
    %v127 = vsel %vm116, %v111, 0
    %129 = vmatprep.subr.bf16.mxu0 0
    %130 = vmatpush1.bf16.msra.mxu0 0
    %131 = vmatprep.subr.bf16.mxu0 0
    %132 = vmatpush1.bf16.msra.mxu0 0
    %133 = vmatprep.subr.bf16.mxu0 0
    %134 = vmatpush1.bf16.msra.mxu0 0
    %135 = vmatprep.subr.bf16.mxu0 0
    %136 = vmatpush1.bf16.msra.mxu0 0
    %137 = vmatprep.subr.bf16.mxu0 0
    %138 = vmatpush1.bf16.msra.mxu0 0
    %139 = vmatprep.subr.bf16.mxu0 0
    %140 = vmatpush1.bf16.msra.mxu0 0
    %141 = vmatprep.subr.bf16.mxu0 0
    %142 = vmatpush1.bf16.msra.mxu0 0
    %143 = vmatprep.subr.bf16.mxu0 %v121
    %144 = vmatpush1.bf16.msra.mxu0 %v118
    %145 = vmatprep.subr.bf16.mxu0 0
    %146 = vmatpush2.bf16.msra.mxu0 0
    %147 = vmatprep.subr.bf16.mxu0 0
    %148 = vmatpush2.bf16.msra.mxu0 0
    %149 = vmatprep.subr.bf16.mxu0 0
    %150 = vmatpush2.bf16.msra.mxu0 0
    %151 = vmatprep.subr.bf16.mxu0 0
    %152 = vmatpush2.bf16.msra.mxu0 0
    %153 = vmatprep.subr.bf16.mxu0 0
    %154 = vmatpush2.bf16.msra.mxu0 0
    %155 = vmatprep.subr.bf16.mxu0 0
    %156 = vmatpush2.bf16.msra.mxu0 0
    %157 = vmatprep.subr.bf16.mxu0 0
    %158 = vmatpush2.bf16.msra.mxu0 0
    %159 = vmatprep.subr.bf16.mxu0 0
    %160 = vmatpush2.bf16.msra.mxu0 0
    %161 = vmatprep.mubr.bf16.mxu0 0
    %162 = vmatmul.mubr.bf16.gmra.mxu0 %v114
    %v163 = vpop.f32.mrf.mxu0
    %v164 = vadd.f32 0.0, %v163
    %v165 = vpop.f32.mrf.mxu0
    %v166 = vadd.f32 0.0, %v165
    %v167 = vpop.f32.mrf.mxu0
    %v168 = vadd.f32 0.0, %v167
    %v169 = vpop.f32.mrf.mxu0
    %v170 = vadd.f32 0.0, %v169
    %171 = vdwg.mxu0
    %172 = vmatprep.subr.bf16.mxu0 0
    %173 = vmatpush1.bf16.msra.mxu0 0
    %174 = vmatprep.subr.bf16.mxu0 0
    %175 = vmatpush1.bf16.msra.mxu0 0
    %176 = vmatprep.subr.bf16.mxu0 0
    %177 = vmatpush1.bf16.msra.mxu0 0
    %178 = vmatprep.subr.bf16.mxu0 0
    %179 = vmatpush1.bf16.msra.mxu0 0
    %180 = vmatprep.subr.bf16.mxu0 0
    %181 = vmatpush1.bf16.msra.mxu0 0
    %182 = vmatprep.subr.bf16.mxu0 0
    %183 = vmatpush1.bf16.msra.mxu0 0
    %184 = vmatprep.subr.bf16.mxu0 0
    %185 = vmatpush1.bf16.msra.mxu0 0
    %186 = vmatprep.subr.bf16.mxu0 %v127
    %187 = vmatpush1.bf16.msra.mxu0 %v124
    %188 = vmatprep.subr.bf16.mxu0 0
    %189 = vmatpush2.bf16.msra.mxu0 0
    %190 = vmatprep.subr.bf16.mxu0 0
    %191 = vmatpush2.bf16.msra.mxu0 0
    %192 = vmatprep.subr.bf16.mxu0 0
    %193 = vmatpush2.bf16.msra.mxu0 0
    %194 = vmatprep.subr.bf16.mxu0 0
    %195 = vmatpush2.bf16.msra.mxu0 0
    %196 = vmatprep.subr.bf16.mxu0 0
    %197 = vmatpush2.bf16.msra.mxu0 0
    %198 = vmatprep.subr.bf16.mxu0 0
    %199 = vmatpush2.bf16.msra.mxu0 0
    %200 = vmatprep.subr.bf16.mxu0 0
    %201 = vmatpush2.bf16.msra.mxu0 0
    %202 = vmatprep.subr.bf16.mxu0 0
    %203 = vmatpush2.bf16.msra.mxu0 0
    %204 = vmatprep.mubr.bf16.mxu0 0
    %205 = vmatmul.mubr.bf16.gmra.mxu0 %v114
    %v206 = vpop.f32.mrf.mxu0
    %v207 = vadd.f32 0.0, %v206
    %v208 = vpop.f32.mrf.mxu0
    %v209 = vadd.f32 0.0, %v208
    %v210 = vpop.f32.mrf.mxu0
    %v211 = vadd.f32 0.0, %v210
    %v212 = vpop.f32.mrf.mxu0
    %v213 = vadd.f32 0.0, %v212
    %214 = vdwg.mxu0
    %v219 = vunpack.c.l.b16 %v89
    %v220 = vunpack.c.h.b16 %v89
    %v221 = vunpack.c.l.b16 %v90
    %v222 = vunpack.c.h.b16 %v90
    %v223 = vunpack.c.l.b16 %v91
    %v224 = vunpack.c.h.b16 %v91
    %v225 = vunpack.c.l.b16 %v92
    %v226 = vunpack.c.h.b16 %v92
    %v227 = vpack.c.b16 %v223, %v219
    %v228 = vpack.c.b16 %v224, %v220
    %v229 = vpack.c.b16 %v225, %v221
    %v230 = vpack.c.b16 %v226, %v222
    %vm231 = vcmask 97280
    %v233 = vsel %vm231, %v85, 0
    %vm235 = vcmask 1045504
    %v237 = vsel %vm235, %v227, 0
    %v240 = vsel %vm235, %v228, 0
    %v243 = vsel %vm235, %v229, 0
    %v246 = vsel %vm235, %v230, 0
    %248 = vmatprep.subr.bf16.mxu0 0
    %249 = vmatpush1.bf16.msra.mxu0 0
    %250 = vmatprep.subr.bf16.mxu0 0
    %251 = vmatpush1.bf16.msra.mxu0 0
    %252 = vmatprep.subr.bf16.mxu0 0
    %253 = vmatpush1.bf16.msra.mxu0 0
    %254 = vmatprep.subr.bf16.mxu0 0
    %255 = vmatpush1.bf16.msra.mxu0 0
    %256 = vmatprep.subr.bf16.mxu0 0
    %257 = vmatpush1.bf16.msra.mxu0 0
    %258 = vmatprep.subr.bf16.mxu0 0
    %259 = vmatpush1.bf16.msra.mxu0 0
    %260 = vmatprep.subr.bf16.mxu0 0
    %261 = vmatpush1.bf16.msra.mxu0 0
    %262 = vmatprep.subr.bf16.mxu0 %v240
    %263 = vmatpush1.bf16.msra.mxu0 %v237
    %264 = vmatprep.subr.bf16.mxu0 0
    %265 = vmatpush2.bf16.msra.mxu0 0
    %266 = vmatprep.subr.bf16.mxu0 0
    %267 = vmatpush2.bf16.msra.mxu0 0
    %268 = vmatprep.subr.bf16.mxu0 0
    %269 = vmatpush2.bf16.msra.mxu0 0
    %270 = vmatprep.subr.bf16.mxu0 0
    %271 = vmatpush2.bf16.msra.mxu0 0
    %272 = vmatprep.subr.bf16.mxu0 0
    %273 = vmatpush2.bf16.msra.mxu0 0
    %274 = vmatprep.subr.bf16.mxu0 0
    %275 = vmatpush2.bf16.msra.mxu0 0
    %276 = vmatprep.subr.bf16.mxu0 0
    %277 = vmatpush2.bf16.msra.mxu0 0
    %278 = vmatprep.subr.bf16.mxu0 0
    %279 = vmatpush2.bf16.msra.mxu0 0
    %280 = vmatprep.mubr.bf16.mxu0 0
    %281 = vmatmul.mubr.bf16.gmra.mxu0 %v233
    %v282 = vpop.f32.mrf.mxu0
    %v283 = vadd.f32 %v164, %v282
    %v284 = vpop.f32.mrf.mxu0
    %v285 = vadd.f32 %v166, %v284
    %v286 = vpop.f32.mrf.mxu0
    %v287 = vadd.f32 %v168, %v286
    %v288 = vpop.f32.mrf.mxu0
    %v289 = vadd.f32 %v170, %v288
    %290 = vdwg.mxu0
    %291 = vmatprep.subr.bf16.mxu0 0
    %292 = vmatpush1.bf16.msra.mxu0 0
    %293 = vmatprep.subr.bf16.mxu0 0
    %294 = vmatpush1.bf16.msra.mxu0 0
    %295 = vmatprep.subr.bf16.mxu0 0
    %296 = vmatpush1.bf16.msra.mxu0 0
    %297 = vmatprep.subr.bf16.mxu0 0
    %298 = vmatpush1.bf16.msra.mxu0 0
    %299 = vmatprep.subr.bf16.mxu0 0
    %300 = vmatpush1.bf16.msra.mxu0 0
    %301 = vmatprep.subr.bf16.mxu0 0
    %302 = vmatpush1.bf16.msra.mxu0 0
    %303 = vmatprep.subr.bf16.mxu0 0
    %304 = vmatpush1.bf16.msra.mxu0 0
    %305 = vmatprep.subr.bf16.mxu0 %v246
    %306 = vmatpush1.bf16.msra.mxu0 %v243
    %307 = vmatprep.subr.bf16.mxu0 0
    %308 = vmatpush2.bf16.msra.mxu0 0
    %309 = vmatprep.subr.bf16.mxu0 0
    %310 = vmatpush2.bf16.msra.mxu0 0
    %311 = vmatprep.subr.bf16.mxu0 0
    %312 = vmatpush2.bf16.msra.mxu0 0
    %313 = vmatprep.subr.bf16.mxu0 0
    %314 = vmatpush2.bf16.msra.mxu0 0
    %315 = vmatprep.subr.bf16.mxu0 0
    %316 = vmatpush2.bf16.msra.mxu0 0
    %317 = vmatprep.subr.bf16.mxu0 0
    %318 = vmatpush2.bf16.msra.mxu0 0
    %319 = vmatprep.subr.bf16.mxu0 0
    %320 = vmatpush2.bf16.msra.mxu0 0
    %321 = vmatprep.subr.bf16.mxu0 0
    %322 = vmatpush2.bf16.msra.mxu0 0
    %323 = vmatprep.mubr.bf16.mxu0 0
    %324 = vmatmul.mubr.bf16.gmra.mxu0 %v233
    %v325 = vpop.f32.mrf.mxu0
    %v326 = vadd.f32 %v207, %v325
    %v327 = vpop.f32.mrf.mxu0
    %v328 = vadd.f32 %v209, %v327
    %v329 = vpop.f32.mrf.mxu0
    %v330 = vadd.f32 %v211, %v329
    %v331 = vpop.f32.mrf.mxu0
    %v332 = vadd.f32 %v213, %v331
    %333 = vdwg.mxu0
    %v336 = vlaneseq
    %v337 = vshrl.u32 %v336, 7
    %v338 = vsub.s32 0, %v337
    %v339 = vrot.slane %v81, %v338
    %v340 = vlaneseq
    %v341 = vshrl.u32 %v340, 7
    %v342 = vsub.s32 4, %v341
    %v343 = vrot.slane %v81, %v342
    %v344 = vlaneseq
    %v345 = vshrl.u32 %v344, 7
    %v346 = vsub.s32 0, %v345
    %v347 = vrot.slane %v82, %v346
    %v348 = vlaneseq
    %v349 = vshrl.u32 %v348, 7
    %v350 = vsub.s32 4, %v349
    %v351 = vrot.slane %v82, %v350
    %v356 = vlaneseq
    %v357 = vshrl.u32 %v356, 7
    %v358 = vsub.s32 0, %v357
    %v359 = vrot.slane %v339, %v358
    %v360 = vlaneseq
    %v361 = vshrl.u32 %v360, 7
    %v362 = vsub.s32 0, %v361
    %v363 = vrot.slane %v343, %v362
    %v364 = vlaneseq
    %v365 = vshrl.u32 %v364, 7
    %v366 = vsub.s32 0, %v365
    %v367 = vrot.slane %v347, %v366
    %v368 = vlaneseq
    %v369 = vshrl.u32 %v368, 7
    %v370 = vsub.s32 0, %v369
    %v371 = vrot.slane %v351, %v370
    %v372 = vadd.f32 %v283, %v359
    %v373 = vadd.f32 %v285, %v363
    %v374 = vadd.f32 %v326, %v367
    %v375 = vadd.f32 %v328, %v371
    %v376 = vadd.f32 %v287, %v359
    %v377 = vadd.f32 %v289, %v363
    %v378 = vadd.f32 %v330, %v367
    %v379 = vadd.f32 %v332, %v371
    %v380 = vmax.f32 %v372, 0.0
    %v381 = vmax.f32 %v373, 0.0
    %v382 = vmax.f32 %v374, 0.0
    %v383 = vmax.f32 %v375, 0.0
    %v384 = vmax.f32 %v376, 0.0
    %v385 = vmax.f32 %v377, 0.0
    %v386 = vmax.f32 %v378, 0.0
    %v387 = vmax.f32 %v379, 0.0
    %v388 = vpack.c.bf16 %v384, %v380
    %v389 = vpack.c.bf16 %v385, %v381
    %v390 = vpack.c.bf16 %v386, %v382
    %v391 = vpack.c.bf16 %v387, %v383
    %v392 = vld [vmem:[#allocation7] sm:$0xff]
    %v393 = vld [vmem:[#allocation7 + $0x8] sm:$0xff]
    %v394 = vld [vmem:[#allocation7 + $0x10] sm:$0xff]
    %v395 = vld [vmem:[#allocation7 + $0x18] sm:$0xff]
    %v396 = vld [vmem:[#allocation7 + $0x20] sm:$0xff]
    %v397 = vld [vmem:[#allocation7 + $0x28] sm:$0xff]
    %v398 = vld [vmem:[#allocation7 + $0x30] sm:$0xff]
    %v399 = vld [vmem:[#allocation7 + $0x38] sm:$0xff]
    %v400 = vld [vmem:[#allocation7 + $0x40] sm:$0xff]
    %v401 = vld [vmem:[#allocation7 + $0x48] sm:$0xff]
    %v402 = vld [vmem:[#allocation7 + $0x50] sm:$0xff]
    %v403 = vld [vmem:[#allocation7 + $0x58] sm:$0xff]
    %v404 = vld [vmem:[#allocation7 + $0x60] sm:$0xff]
    %v405 = vld [vmem:[#allocation7 + $0x68] sm:$0xff]
    %v406 = vld [vmem:[#allocation7 + $0x70] sm:$0xff]
    %v407 = vld [vmem:[#allocation7 + $0x78] sm:$0xff]
    %v408 = vld [vmem:[#allocation7 + $0x80] sm:$0xff]
    %v409 = vld [vmem:[#allocation7 + $0x88] sm:$0xff]
    %v410 = vld [vmem:[#allocation7 + $0x90] sm:$0xff]
    %v411 = vld [vmem:[#allocation7 + $0x98] sm:$0xff]
    %v412 = vld [vmem:[#allocation7 + $0xa0] sm:$0xff]
    %v413 = vld [vmem:[#allocation7 + $0xa8] sm:$0xff]
    %v414 = vld [vmem:[#allocation7 + $0xb0] sm:$0xff]
    %v415 = vld [vmem:[#allocation7 + $0xb8] sm:$0xff]
    %v416 = vld [vmem:[#allocation7 + $0xc0] sm:$0xff]
    %v417 = vld [vmem:[#allocation7 + $0xc8] sm:$0xff]
    %v418 = vld [vmem:[#allocation7 + $0xd0] sm:$0xff]
    %v419 = vld [vmem:[#allocation7 + $0xd8] sm:$0xff]
    %v420 = vld [vmem:[#allocation7 + $0xe0] sm:$0xff]
    %v421 = vld [vmem:[#allocation7 + $0xe8] sm:$0xff]
    %v422 = vld [vmem:[#allocation7 + $0xf0] sm:$0xff]
    %v423 = vld [vmem:[#allocation7 + $0xf8] sm:$0xff]
    %v424 = vlaneseq
    %v425 = vshrl.u32 %v424, 7
    %v426 = vsub.s32 1, %v425
    %v427 = vrot.slane %v81, %v426
    %v428 = vlaneseq
    %v429 = vshrl.u32 %v428, 7
    %v430 = vsub.s32 5, %v429
    %v431 = vrot.slane %v81, %v430
    %v434 = vlaneseq
    %v435 = vshrl.u32 %v434, 7
    %v436 = vsub.s32 1, %v435
    %v437 = vrot.slane %v427, %v436
    %v438 = vlaneseq
    %v439 = vshrl.u32 %v438, 7
    %v440 = vsub.s32 1, %v439
    %v441 = vrot.slane %v431, %v440
    %v474 = vunpack.c.l.b16 %v392
    %v475 = vunpack.c.h.b16 %v392
    %v476 = vunpack.c.l.b16 %v393
    %v477 = vunpack.c.h.b16 %v393
    %v478 = vunpack.c.l.b16 %v394
    %v479 = vunpack.c.h.b16 %v394
    %v480 = vunpack.c.l.b16 %v395
    %v481 = vunpack.c.h.b16 %v395
    %v482 = vunpack.c.l.b16 %v396
    %v483 = vunpack.c.h.b16 %v396
    %v484 = vunpack.c.l.b16 %v397
    %v485 = vunpack.c.h.b16 %v397
    %v486 = vunpack.c.l.b16 %v398
    %v487 = vunpack.c.h.b16 %v398
    %v488 = vunpack.c.l.b16 %v399
    %v489 = vunpack.c.h.b16 %v399
    %v490 = vunpack.c.l.b16 %v400
    %v491 = vunpack.c.h.b16 %v400
    %v492 = vunpack.c.l.b16 %v401
    %v493 = vunpack.c.h.b16 %v401
    %v494 = vunpack.c.l.b16 %v402
    %v495 = vunpack.c.h.b16 %v402
    %v496 = vunpack.c.l.b16 %v403
    %v497 = vunpack.c.h.b16 %v403
    %v498 = vunpack.c.l.b16 %v404
    %v499 = vunpack.c.h.b16 %v404
    %v500 = vunpack.c.l.b16 %v405
    %v501 = vunpack.c.h.b16 %v405
    %v502 = vunpack.c.l.b16 %v406
    %v503 = vunpack.c.h.b16 %v406
    %v504 = vunpack.c.l.b16 %v407
    %v505 = vunpack.c.h.b16 %v407
    %v506 = vunpack.c.l.b16 %v408
    %v507 = vunpack.c.h.b16 %v408
    %v508 = vunpack.c.l.b16 %v409
    %v509 = vunpack.c.h.b16 %v409
    %v510 = vunpack.c.l.b16 %v410
    %v511 = vunpack.c.h.b16 %v410
    %v512 = vunpack.c.l.b16 %v411
    %v513 = vunpack.c.h.b16 %v411
    %v514 = vunpack.c.l.b16 %v412
    %v515 = vunpack.c.h.b16 %v412
    %v516 = vunpack.c.l.b16 %v413
    %v517 = vunpack.c.h.b16 %v413
    %v518 = vunpack.c.l.b16 %v414
    %v519 = vunpack.c.h.b16 %v414
    %v520 = vunpack.c.l.b16 %v415
    %v521 = vunpack.c.h.b16 %v415
    %v522 = vunpack.c.l.b16 %v416
    %v523 = vunpack.c.h.b16 %v416
    %v524 = vunpack.c.l.b16 %v417
    %v525 = vunpack.c.h.b16 %v417
    %v526 = vunpack.c.l.b16 %v418
    %v527 = vunpack.c.h.b16 %v418
    %v528 = vunpack.c.l.b16 %v419
    %v529 = vunpack.c.h.b16 %v419
    %v530 = vunpack.c.l.b16 %v420
    %v531 = vunpack.c.h.b16 %v420
    %v532 = vunpack.c.l.b16 %v421
    %v533 = vunpack.c.h.b16 %v421
    %v534 = vunpack.c.l.b16 %v422
    %v535 = vunpack.c.h.b16 %v422
    %v536 = vunpack.c.l.b16 %v423
    %v537 = vunpack.c.h.b16 %v423
    %v538 = vpack.c.b16 %v476, %v474
    %v539 = vpack.c.b16 %v477, %v475
    %v540 = vpack.c.b16 %v480, %v478
    %v541 = vpack.c.b16 %v481, %v479
    %v542 = vpack.c.b16 %v484, %v482
    %v543 = vpack.c.b16 %v485, %v483
    %v544 = vpack.c.b16 %v488, %v486
    %v545 = vpack.c.b16 %v489, %v487
    %v546 = vpack.c.b16 %v492, %v490
    %v547 = vpack.c.b16 %v493, %v491
    %v548 = vpack.c.b16 %v496, %v494
    %v549 = vpack.c.b16 %v497, %v495
    %v550 = vpack.c.b16 %v500, %v498
    %v551 = vpack.c.b16 %v501, %v499
    %v552 = vpack.c.b16 %v504, %v502
    %v553 = vpack.c.b16 %v505, %v503
    %v554 = vpack.c.b16 %v508, %v506
    %v555 = vpack.c.b16 %v509, %v507
    %v556 = vpack.c.b16 %v512, %v510
    %v557 = vpack.c.b16 %v513, %v511
    %v558 = vpack.c.b16 %v516, %v514
    %v559 = vpack.c.b16 %v517, %v515
    %v560 = vpack.c.b16 %v520, %v518
    %v561 = vpack.c.b16 %v521, %v519
    %v562 = vpack.c.b16 %v524, %v522
    %v563 = vpack.c.b16 %v525, %v523
    %v564 = vpack.c.b16 %v528, %v526
    %v565 = vpack.c.b16 %v529, %v527
    %v566 = vpack.c.b16 %v532, %v530
    %v567 = vpack.c.b16 %v533, %v531
    %v568 = vpack.c.b16 %v536, %v534
    %v569 = vpack.c.b16 %v537, %v535
    %602 = vmatprep.subr.bf16.mxu0 %v553
    %603 = vmatpush1.bf16.msra.mxu0 %v552
    %604 = vmatprep.subr.bf16.mxu0 %v551
    %605 = vmatpush1.bf16.msra.mxu0 %v550
    %606 = vmatprep.subr.bf16.mxu0 %v549
    %607 = vmatpush1.bf16.msra.mxu0 %v548
    %608 = vmatprep.subr.bf16.mxu0 %v547
    %609 = vmatpush1.bf16.msra.mxu0 %v546
    %610 = vmatprep.subr.bf16.mxu0 %v545
    %611 = vmatpush1.bf16.msra.mxu0 %v544
    %612 = vmatprep.subr.bf16.mxu0 %v543
    %613 = vmatpush1.bf16.msra.mxu0 %v542
    %614 = vmatprep.subr.bf16.mxu0 %v541
    %615 = vmatpush1.bf16.msra.mxu0 %v540
    %616 = vmatprep.subr.bf16.mxu0 %v539
    %617 = vmatpush1.bf16.msra.mxu0 %v538
    %618 = vmatprep.subr.bf16.mxu0 %v569
    %619 = vmatpush2.bf16.msra.mxu0 %v568
    %620 = vmatprep.subr.bf16.mxu0 %v567
    %621 = vmatpush2.bf16.msra.mxu0 %v566
    %622 = vmatprep.subr.bf16.mxu0 %v565
    %623 = vmatpush2.bf16.msra.mxu0 %v564
    %624 = vmatprep.subr.bf16.mxu0 %v563
    %625 = vmatpush2.bf16.msra.mxu0 %v562
    %626 = vmatprep.subr.bf16.mxu0 %v561
    %627 = vmatpush2.bf16.msra.mxu0 %v560
    %628 = vmatprep.subr.bf16.mxu0 %v559
    %629 = vmatpush2.bf16.msra.mxu0 %v558
    %630 = vmatprep.subr.bf16.mxu0 %v557
    %631 = vmatpush2.bf16.msra.mxu0 %v556
    %632 = vmatprep.subr.bf16.mxu0 %v555
    %633 = vmatpush2.bf16.msra.mxu0 %v554
    %634 = vmatprep.mubr.bf16.mxu0 %v389
    %635 = vmatmul.mubr.bf16.gmra.mxu0 %v388
    %v636 = vpop.f32.mrf.mxu0
    %v637 = vadd.f32 %v437, %v636
    %v638 = vpop.f32.mrf.mxu0
    %v639 = vadd.f32 %v441, %v638
    %v640 = vpop.f32.mrf.mxu0
    %v641 = vadd.f32 %v437, %v640
    %v642 = vpop.f32.mrf.mxu0
    %v643 = vadd.f32 %v441, %v642
    %644 = vdwg.mxu0
    %v645 = vmax.f32 %v637, 0.0
    %v646 = vmax.f32 %v639, 0.0
    %v647 = vmax.f32 %v641, 0.0
    %v648 = vmax.f32 %v643, 0.0
    %s649 = scalar_lea.vmem [#allocation7], 256
    %v650 = vld [vmem:[%s649] sm:$0xff]
    %v651 = vld [vmem:[%s649 + $0x8] sm:$0xff]
    %v652 = vld [vmem:[%s649 + $0x10] sm:$0xff]
    %v653 = vld [vmem:[%s649 + $0x18] sm:$0xff]
    %v654 = vld [vmem:[%s649 + $0x20] sm:$0xff]
    %v655 = vld [vmem:[%s649 + $0x28] sm:$0xff]
    %v656 = vld [vmem:[%s649 + $0x30] sm:$0xff]
    %v657 = vld [vmem:[%s649 + $0x38] sm:$0xff]
    %v658 = vld [vmem:[%s649 + $0x40] sm:$0xff]
    %v659 = vld [vmem:[%s649 + $0x48] sm:$0xff]
    %v660 = vld [vmem:[%s649 + $0x50] sm:$0xff]
    %v661 = vld [vmem:[%s649 + $0x58] sm:$0xff]
    %v662 = vld [vmem:[%s649 + $0x60] sm:$0xff]
    %v663 = vld [vmem:[%s649 + $0x68] sm:$0xff]
    %v664 = vld [vmem:[%s649 + $0x70] sm:$0xff]
    %v665 = vld [vmem:[%s649 + $0x78] sm:$0xff]
    %v666 = vld [vmem:[%s649 + $0x80] sm:$0xff]
    %v667 = vld [vmem:[%s649 + $0x88] sm:$0xff]
    %v668 = vld [vmem:[%s649 + $0x90] sm:$0xff]
    %v669 = vld [vmem:[%s649 + $0x98] sm:$0xff]
    %v670 = vld [vmem:[%s649 + $0xa0] sm:$0xff]
    %v671 = vld [vmem:[%s649 + $0xa8] sm:$0xff]
    %v672 = vld [vmem:[%s649 + $0xb0] sm:$0xff]
    %v673 = vld [vmem:[%s649 + $0xb8] sm:$0xff]
    %v674 = vld [vmem:[%s649 + $0xc0] sm:$0xff]
    %v675 = vld [vmem:[%s649 + $0xc8] sm:$0xff]
    %v676 = vld [vmem:[%s649 + $0xd0] sm:$0xff]
    %v677 = vld [vmem:[%s649 + $0xd8] sm:$0xff]
    %v678 = vld [vmem:[%s649 + $0xe0] sm:$0xff]
    %v679 = vld [vmem:[%s649 + $0xe8] sm:$0xff]
    %v680 = vld [vmem:[%s649 + $0xf0] sm:$0xff]
    %v681 = vld [vmem:[%s649 + $0xf8] sm:$0xff]
    %v682 = vlaneseq
    %v683 = vshrl.u32 %v682, 7
    %v684 = vsub.s32 1, %v683
    %v685 = vrot.slane %v82, %v684
    %v686 = vlaneseq
    %v687 = vshrl.u32 %v686, 7
    %v688 = vsub.s32 5, %v687
    %v689 = vrot.slane %v82, %v688
    %v692 = vlaneseq
    %v693 = vshrl.u32 %v692, 7
    %v694 = vsub.s32 1, %v693
    %v695 = vrot.slane %v685, %v694
    %v696 = vlaneseq
    %v697 = vshrl.u32 %v696, 7
    %v698 = vsub.s32 1, %v697
    %v699 = vrot.slane %v689, %v698
    %v732 = vunpack.c.l.b16 %v650
    %v733 = vunpack.c.h.b16 %v650
    %v734 = vunpack.c.l.b16 %v651
    %v735 = vunpack.c.h.b16 %v651
    %v736 = vunpack.c.l.b16 %v652
    %v737 = vunpack.c.h.b16 %v652
    %v738 = vunpack.c.l.b16 %v653
    %v739 = vunpack.c.h.b16 %v653
    %v740 = vunpack.c.l.b16 %v654
    %v741 = vunpack.c.h.b16 %v654
    %v742 = vunpack.c.l.b16 %v655
    %v743 = vunpack.c.h.b16 %v655
    %v744 = vunpack.c.l.b16 %v656
    %v745 = vunpack.c.h.b16 %v656
    %v746 = vunpack.c.l.b16 %v657
    %v747 = vunpack.c.h.b16 %v657
    %v748 = vunpack.c.l.b16 %v658
    %v749 = vunpack.c.h.b16 %v658
    %v750 = vunpack.c.l.b16 %v659
    %v751 = vunpack.c.h.b16 %v659
    %v752 = vunpack.c.l.b16 %v660
    %v753 = vunpack.c.h.b16 %v660
    %v754 = vunpack.c.l.b16 %v661
    %v755 = vunpack.c.h.b16 %v661
    %v756 = vunpack.c.l.b16 %v662
    %v757 = vunpack.c.h.b16 %v662
    %v758 = vunpack.c.l.b16 %v663
    %v759 = vunpack.c.h.b16 %v663
    %v760 = vunpack.c.l.b16 %v664
    %v761 = vunpack.c.h.b16 %v664
    %v762 = vunpack.c.l.b16 %v665
    %v763 = vunpack.c.h.b16 %v665
    %v764 = vunpack.c.l.b16 %v666
    %v765 = vunpack.c.h.b16 %v666
    %v766 = vunpack.c.l.b16 %v667
    %v767 = vunpack.c.h.b16 %v667
    %v768 = vunpack.c.l.b16 %v668
    %v769 = vunpack.c.h.b16 %v668
    %v770 = vunpack.c.l.b16 %v669
    %v771 = vunpack.c.h.b16 %v669
    %v772 = vunpack.c.l.b16 %v670
    %v773 = vunpack.c.h.b16 %v670
    %v774 = vunpack.c.l.b16 %v671
    %v775 = vunpack.c.h.b16 %v671
    %v776 = vunpack.c.l.b16 %v672
    %v777 = vunpack.c.h.b16 %v672
    %v778 = vunpack.c.l.b16 %v673
    %v779 = vunpack.c.h.b16 %v673
    %v780 = vunpack.c.l.b16 %v674
    %v781 = vunpack.c.h.b16 %v674
    %v782 = vunpack.c.l.b16 %v675
    %v783 = vunpack.c.h.b16 %v675
    %v784 = vunpack.c.l.b16 %v676
    %v785 = vunpack.c.h.b16 %v676
    %v786 = vunpack.c.l.b16 %v677
    %v787 = vunpack.c.h.b16 %v677
    %v788 = vunpack.c.l.b16 %v678
    %v789 = vunpack.c.h.b16 %v678
    %v790 = vunpack.c.l.b16 %v679
    %v791 = vunpack.c.h.b16 %v679
    %v792 = vunpack.c.l.b16 %v680
    %v793 = vunpack.c.h.b16 %v680
    %v794 = vunpack.c.l.b16 %v681
    %v795 = vunpack.c.h.b16 %v681
    %v796 = vpack.c.b16 %v734, %v732
    %v797 = vpack.c.b16 %v735, %v733
    %v798 = vpack.c.b16 %v738, %v736
    %v799 = vpack.c.b16 %v739, %v737
    %v800 = vpack.c.b16 %v742, %v740
    %v801 = vpack.c.b16 %v743, %v741
    %v802 = vpack.c.b16 %v746, %v744
    %v803 = vpack.c.b16 %v747, %v745
    %v804 = vpack.c.b16 %v750, %v748
    %v805 = vpack.c.b16 %v751, %v749
    %v806 = vpack.c.b16 %v754, %v752
    %v807 = vpack.c.b16 %v755, %v753
    %v808 = vpack.c.b16 %v758, %v756
    %v809 = vpack.c.b16 %v759, %v757
    %v810 = vpack.c.b16 %v762, %v760
    %v811 = vpack.c.b16 %v763, %v761
    %v812 = vpack.c.b16 %v766, %v764
    %v813 = vpack.c.b16 %v767, %v765
    %v814 = vpack.c.b16 %v770, %v768
    %v815 = vpack.c.b16 %v771, %v769
    %v816 = vpack.c.b16 %v774, %v772
    %v817 = vpack.c.b16 %v775, %v773
    %v818 = vpack.c.b16 %v778, %v776
    %v819 = vpack.c.b16 %v779, %v777
    %v820 = vpack.c.b16 %v782, %v780
    %v821 = vpack.c.b16 %v783, %v781
    %v822 = vpack.c.b16 %v786, %v784
    %v823 = vpack.c.b16 %v787, %v785
    %v824 = vpack.c.b16 %v790, %v788
    %v825 = vpack.c.b16 %v791, %v789
    %v826 = vpack.c.b16 %v794, %v792
    %v827 = vpack.c.b16 %v795, %v793
    %860 = vmatprep.subr.bf16.mxu0 %v811
    %861 = vmatpush1.bf16.msra.mxu0 %v810
    %862 = vmatprep.subr.bf16.mxu0 %v809
    %863 = vmatpush1.bf16.msra.mxu0 %v808
    %864 = vmatprep.subr.bf16.mxu0 %v807
    %865 = vmatpush1.bf16.msra.mxu0 %v806
    %866 = vmatprep.subr.bf16.mxu0 %v805
    %867 = vmatpush1.bf16.msra.mxu0 %v804
    %868 = vmatprep.subr.bf16.mxu0 %v803
    %869 = vmatpush1.bf16.msra.mxu0 %v802
    %870 = vmatprep.subr.bf16.mxu0 %v801
    %871 = vmatpush1.bf16.msra.mxu0 %v800
    %872 = vmatprep.subr.bf16.mxu0 %v799
    %873 = vmatpush1.bf16.msra.mxu0 %v798
    %874 = vmatprep.subr.bf16.mxu0 %v797
    %875 = vmatpush1.bf16.msra.mxu0 %v796
    %876 = vmatprep.subr.bf16.mxu0 %v827
    %877 = vmatpush2.bf16.msra.mxu0 %v826
    %878 = vmatprep.subr.bf16.mxu0 %v825
    %879 = vmatpush2.bf16.msra.mxu0 %v824
    %880 = vmatprep.subr.bf16.mxu0 %v823
    %881 = vmatpush2.bf16.msra.mxu0 %v822
    %882 = vmatprep.subr.bf16.mxu0 %v821
    %883 = vmatpush2.bf16.msra.mxu0 %v820
    %884 = vmatprep.subr.bf16.mxu0 %v819
    %885 = vmatpush2.bf16.msra.mxu0 %v818
    %886 = vmatprep.subr.bf16.mxu0 %v817
    %887 = vmatpush2.bf16.msra.mxu0 %v816
    %888 = vmatprep.subr.bf16.mxu0 %v815
    %889 = vmatpush2.bf16.msra.mxu0 %v814
    %890 = vmatprep.subr.bf16.mxu0 %v813
    %891 = vmatpush2.bf16.msra.mxu0 %v812
    %892 = vmatprep.mubr.bf16.mxu0 %v391
    %893 = vmatmul.mubr.bf16.gmra.mxu0 %v390
    %v894 = vpop.f32.mrf.mxu0
    %v895 = vadd.f32 %v695, %v894
    %v896 = vpop.f32.mrf.mxu0
    %v897 = vadd.f32 %v699, %v896
    %v898 = vpop.f32.mrf.mxu0
    %v899 = vadd.f32 %v695, %v898
    %v900 = vpop.f32.mrf.mxu0
    %v901 = vadd.f32 %v699, %v900
    %902 = vdwg.mxu0
    %v903 = vmax.f32 %v895, 0.0
    %v904 = vmax.f32 %v897, 0.0
    %v905 = vmax.f32 %v899, 0.0
    %v906 = vmax.f32 %v901, 0.0
    %v907 = vpack.c.bf16 %v647, %v645
    %v908 = vpack.c.bf16 %v648, %v646
    %v909 = vpack.c.bf16 %v905, %v903
    %v910 = vpack.c.bf16 %v906, %v904
    %v911 = vld [vmem:[#allocation8] sm:$0xf]
    %v912 = vld [vmem:[#allocation8 + $0x4] sm:$0xf]
    %v913 = vld [vmem:[#allocation8 + $0x8] sm:$0xf]
    %v914 = vld [vmem:[#allocation8 + $0xc] sm:$0xf]
    %v915 = vld [vmem:[#allocation8 + $0x10] sm:$0xf]
    %v916 = vld [vmem:[#allocation8 + $0x14] sm:$0xf]
    %v917 = vld [vmem:[#allocation8 + $0x18] sm:$0xf]
    %v918 = vld [vmem:[#allocation8 + $0x1c] sm:$0xf]
    %v919 = vld [vmem:[#allocation8 + $0x20] sm:$0xf]
    %v920 = vld [vmem:[#allocation8 + $0x24] sm:$0xf]
    %v921 = vld [vmem:[#allocation8 + $0x28] sm:$0xf]
    %v922 = vld [vmem:[#allocation8 + $0x2c] sm:$0xf]
    %v923 = vld [vmem:[#allocation8 + $0x30] sm:$0xf]
    %v924 = vld [vmem:[#allocation8 + $0x34] sm:$0xf]
    %v925 = vld [vmem:[#allocation8 + $0x38] sm:$0xf]
    %v926 = vld [vmem:[#allocation8 + $0x3c] sm:$0xf]
    %v927 = vld [vmem:[#allocation8 + $0x40] sm:$0xf]
    %v928 = vld [vmem:[#allocation8 + $0x44] sm:$0xf]
    %v929 = vld [vmem:[#allocation8 + $0x48] sm:$0xf]
    %v930 = vld [vmem:[#allocation8 + $0x4c] sm:$0xf]
    %v931 = vld [vmem:[#allocation8 + $0x50] sm:$0xf]
    %v932 = vld [vmem:[#allocation8 + $0x54] sm:$0xf]
    %v933 = vld [vmem:[#allocation8 + $0x58] sm:$0xf]
    %v934 = vld [vmem:[#allocation8 + $0x5c] sm:$0xf]
    %v935 = vld [vmem:[#allocation8 + $0x60] sm:$0xf]
    %v936 = vld [vmem:[#allocation8 + $0x64] sm:$0xf]
    %v937 = vld [vmem:[#allocation8 + $0x68] sm:$0xf]
    %v938 = vld [vmem:[#allocation8 + $0x6c] sm:$0xf]
    %v939 = vld [vmem:[#allocation8 + $0x70] sm:$0xf]
    %v940 = vld [vmem:[#allocation8 + $0x74] sm:$0xf]
    %v941 = vld [vmem:[#allocation8 + $0x78] sm:$0xf]
    %v942 = vld [vmem:[#allocation8 + $0x7c] sm:$0xf]
    %v943 = vld [vmem:[#allocation8 + $0x80] sm:$0xf]
    %v944 = vld [vmem:[#allocation8 + $0x84] sm:$0xf]
    %v945 = vld [vmem:[#allocation8 + $0x88] sm:$0xf]
    %v946 = vld [vmem:[#allocation8 + $0x8c] sm:$0xf]
    %v947 = vld [vmem:[#allocation8 + $0x90] sm:$0xf]
    %v948 = vld [vmem:[#allocation8 + $0x94] sm:$0xf]
    %v949 = vld [vmem:[#allocation8 + $0x98] sm:$0xf]
    %v950 = vld [vmem:[#allocation8 + $0x9c] sm:$0xf]
    %v951 = vld [vmem:[#allocation8 + $0xa0] sm:$0xf]
    %v952 = vld [vmem:[#allocation8 + $0xa4] sm:$0xf]
    %v953 = vld [vmem:[#allocation8 + $0xa8] sm:$0xf]
    %v954 = vld [vmem:[#allocation8 + $0xac] sm:$0xf]
    %v955 = vld [vmem:[#allocation8 + $0xb0] sm:$0xf]
    %v956 = vld [vmem:[#allocation8 + $0xb4] sm:$0xf]
    %v957 = vld [vmem:[#allocation8 + $0xb8] sm:$0xf]
    %v958 = vld [vmem:[#allocation8 + $0xbc] sm:$0xf]
    %v959 = vld [vmem:[#allocation8 + $0xc0] sm:$0xf]
    %v960 = vld [vmem:[#allocation8 + $0xc4] sm:$0xf]
    %v961 = vld [vmem:[#allocation8 + $0xc8] sm:$0xf]
    %v962 = vld [vmem:[#allocation8 + $0xcc] sm:$0xf]
    %v963 = vld [vmem:[#allocation8 + $0xd0] sm:$0xf]
    %v964 = vld [vmem:[#allocation8 + $0xd4] sm:$0xf]
    %v965 = vld [vmem:[#allocation8 + $0xd8] sm:$0xf]
    %v966 = vld [vmem:[#allocation8 + $0xdc] sm:$0xf]
    %v967 = vld [vmem:[#allocation8 + $0xe0] sm:$0xf]
    %v968 = vld [vmem:[#allocation8 + $0xe4] sm:$0xf]
    %v969 = vld [vmem:[#allocation8 + $0xe8] sm:$0xf]
    %v970 = vld [vmem:[#allocation8 + $0xec] sm:$0xf]
    %v971 = vld [vmem:[#allocation8 + $0xf0] sm:$0xf]
    %v972 = vld [vmem:[#allocation8 + $0xf4] sm:$0xf]
    %v973 = vld [vmem:[#allocation8 + $0xf8] sm:$0xf]
    %v974 = vld [vmem:[#allocation8 + $0xfc] sm:$0xf]
    %v975 = vlaneseq
    %v976 = vshrl.u32 %v975, 7
    %v977 = vsub.s32 2, %v976
    %v978 = vrot.slane %v81, %v977
    %v1043 = vunpack.c.l.b16 %v911
    %v1044 = vunpack.c.l.b16 %v912
    %v1045 = vunpack.c.l.b16 %v913
    %v1046 = vunpack.c.l.b16 %v914
    %v1047 = vunpack.c.l.b16 %v915
    %v1048 = vunpack.c.l.b16 %v916
    %v1049 = vunpack.c.l.b16 %v917
    %v1050 = vunpack.c.l.b16 %v918
    %v1051 = vunpack.c.l.b16 %v919
    %v1052 = vunpack.c.l.b16 %v920
    %v1053 = vunpack.c.l.b16 %v921
    %v1054 = vunpack.c.l.b16 %v922
    %v1055 = vunpack.c.l.b16 %v923
    %v1056 = vunpack.c.l.b16 %v924
    %v1057 = vunpack.c.l.b16 %v925
    %v1058 = vunpack.c.l.b16 %v926
    %v1059 = vunpack.c.l.b16 %v927
    %v1060 = vunpack.c.l.b16 %v928
    %v1061 = vunpack.c.l.b16 %v929
    %v1062 = vunpack.c.l.b16 %v930
    %v1063 = vunpack.c.l.b16 %v931
    %v1064 = vunpack.c.l.b16 %v932
    %v1065 = vunpack.c.l.b16 %v933
    %v1066 = vunpack.c.l.b16 %v934
    %v1067 = vunpack.c.l.b16 %v935
    %v1068 = vunpack.c.l.b16 %v936
    %v1069 = vunpack.c.l.b16 %v937
    %v1070 = vunpack.c.l.b16 %v938
    %v1071 = vunpack.c.l.b16 %v939
    %v1072 = vunpack.c.l.b16 %v940
    %v1073 = vunpack.c.l.b16 %v941
    %v1074 = vunpack.c.l.b16 %v942
    %v1075 = vunpack.c.l.b16 %v943
    %v1076 = vunpack.c.l.b16 %v944
    %v1077 = vunpack.c.l.b16 %v945
    %v1078 = vunpack.c.l.b16 %v946
    %v1079 = vunpack.c.l.b16 %v947
    %v1080 = vunpack.c.l.b16 %v948
    %v1081 = vunpack.c.l.b16 %v949
    %v1082 = vunpack.c.l.b16 %v950
    %v1083 = vunpack.c.l.b16 %v951
    %v1084 = vunpack.c.l.b16 %v952
    %v1085 = vunpack.c.l.b16 %v953
    %v1086 = vunpack.c.l.b16 %v954
    %v1087 = vunpack.c.l.b16 %v955
    %v1088 = vunpack.c.l.b16 %v956
    %v1089 = vunpack.c.l.b16 %v957
    %v1090 = vunpack.c.l.b16 %v958
    %v1091 = vunpack.c.l.b16 %v959
    %v1092 = vunpack.c.l.b16 %v960
    %v1093 = vunpack.c.l.b16 %v961
    %v1094 = vunpack.c.l.b16 %v962
    %v1095 = vunpack.c.l.b16 %v963
    %v1096 = vunpack.c.l.b16 %v964
    %v1097 = vunpack.c.l.b16 %v965
    %v1098 = vunpack.c.l.b16 %v966
    %v1099 = vunpack.c.l.b16 %v967
    %v1100 = vunpack.c.l.b16 %v968
    %v1101 = vunpack.c.l.b16 %v969
    %v1102 = vunpack.c.l.b16 %v970
    %v1103 = vunpack.c.l.b16 %v971
    %v1104 = vunpack.c.l.b16 %v972
    %v1105 = vunpack.c.l.b16 %v973
    %v1106 = vunpack.c.l.b16 %v974
    %v1107 = vpack.c.b16 %v1044, %v1043
    %v1108 = vpack.c.b16 %v1046, %v1045
    %v1109 = vpack.c.b16 %v1048, %v1047
    %v1110 = vpack.c.b16 %v1050, %v1049
    %v1111 = vpack.c.b16 %v1052, %v1051
    %v1112 = vpack.c.b16 %v1054, %v1053
    %v1113 = vpack.c.b16 %v1056, %v1055
    %v1114 = vpack.c.b16 %v1058, %v1057
    %v1115 = vpack.c.b16 %v1060, %v1059
    %v1116 = vpack.c.b16 %v1062, %v1061
    %v1117 = vpack.c.b16 %v1064, %v1063
    %v1118 = vpack.c.b16 %v1066, %v1065
    %v1119 = vpack.c.b16 %v1068, %v1067
    %v1120 = vpack.c.b16 %v1070, %v1069
    %v1121 = vpack.c.b16 %v1072, %v1071
    %v1122 = vpack.c.b16 %v1074, %v1073
    %v1123 = vpack.c.b16 %v1076, %v1075
    %v1124 = vpack.c.b16 %v1078, %v1077
    %v1125 = vpack.c.b16 %v1080, %v1079
    %v1126 = vpack.c.b16 %v1082, %v1081
    %v1127 = vpack.c.b16 %v1084, %v1083
    %v1128 = vpack.c.b16 %v1086, %v1085
    %v1129 = vpack.c.b16 %v1088, %v1087
    %v1130 = vpack.c.b16 %v1090, %v1089
    %v1131 = vpack.c.b16 %v1092, %v1091
    %v1132 = vpack.c.b16 %v1094, %v1093
    %v1133 = vpack.c.b16 %v1096, %v1095
    %v1134 = vpack.c.b16 %v1098, %v1097
    %v1135 = vpack.c.b16 %v1100, %v1099
    %v1136 = vpack.c.b16 %v1102, %v1101
    %v1137 = vpack.c.b16 %v1104, %v1103
    %v1138 = vpack.c.b16 %v1106, %v1105
    %1171 = vmatprep.subr.bf16.mxu0 0
    %1172 = vmatpush1.bf16.msra.mxu0 %v1114
    %1173 = vmatprep.subr.bf16.mxu0 0
    %1174 = vmatpush1.bf16.msra.mxu0 %v1113
    %1175 = vmatprep.subr.bf16.mxu0 0
    %1176 = vmatpush1.bf16.msra.mxu0 %v1112
    %1177 = vmatprep.subr.bf16.mxu0 0
    %1178 = vmatpush1.bf16.msra.mxu0 %v1111
    %1179 = vmatprep.subr.bf16.mxu0 0
    %1180 = vmatpush1.bf16.msra.mxu0 %v1110
    %1181 = vmatprep.subr.bf16.mxu0 0
    %1182 = vmatpush1.bf16.msra.mxu0 %v1109
    %1183 = vmatprep.subr.bf16.mxu0 0
    %1184 = vmatpush1.bf16.msra.mxu0 %v1108
    %1185 = vmatprep.subr.bf16.mxu0 0
    %1186 = vmatpush1.bf16.msra.mxu0 %v1107
    %1187 = vmatprep.subr.bf16.mxu0 0
    %1188 = vmatpush2.bf16.msra.mxu0 %v1122
    %1189 = vmatprep.subr.bf16.mxu0 0
    %1190 = vmatpush2.bf16.msra.mxu0 %v1121
    %1191 = vmatprep.subr.bf16.mxu0 0
    %1192 = vmatpush2.bf16.msra.mxu0 %v1120
    %1193 = vmatprep.subr.bf16.mxu0 0
    %1194 = vmatpush2.bf16.msra.mxu0 %v1119
    %1195 = vmatprep.subr.bf16.mxu0 0
    %1196 = vmatpush2.bf16.msra.mxu0 %v1118
    %1197 = vmatprep.subr.bf16.mxu0 0
    %1198 = vmatpush2.bf16.msra.mxu0 %v1117
    %1199 = vmatprep.subr.bf16.mxu0 0
    %1200 = vmatpush2.bf16.msra.mxu0 %v1116
    %1201 = vmatprep.subr.bf16.mxu0 0
    %1202 = vmatpush2.bf16.msra.mxu0 %v1115
    %1203 = vmatprep.mubr.bf16.mxu0 %v908
    %1204 = vmatmul.mubr.bf16.gmra.mxu0 %v907
    %v1205 = vpop.f32.mrf.mxu0
    %v1206 = vadd.f32 %v978, %v1205
    %v1207 = vpop.f32.mrf.mxu0
    %v1208 = vpop.f32.mrf.mxu0
    %v1209 = vadd.f32 %v978, %v1208
    %v1210 = vpop.f32.mrf.mxu0
    %1211 = vdwg.mxu0
    %1212 = vmatprep.subr.bf16.mxu0 0
    %1213 = vmatpush1.bf16.msra.mxu0 %v1130
    %1214 = vmatprep.subr.bf16.mxu0 0
    %1215 = vmatpush1.bf16.msra.mxu0 %v1129
    %1216 = vmatprep.subr.bf16.mxu0 0
    %1217 = vmatpush1.bf16.msra.mxu0 %v1128
    %1218 = vmatprep.subr.bf16.mxu0 0
    %1219 = vmatpush1.bf16.msra.mxu0 %v1127
    %1220 = vmatprep.subr.bf16.mxu0 0
    %1221 = vmatpush1.bf16.msra.mxu0 %v1126
    %1222 = vmatprep.subr.bf16.mxu0 0
    %1223 = vmatpush1.bf16.msra.mxu0 %v1125
    %1224 = vmatprep.subr.bf16.mxu0 0
    %1225 = vmatpush1.bf16.msra.mxu0 %v1124
    %1226 = vmatprep.subr.bf16.mxu0 0
    %1227 = vmatpush1.bf16.msra.mxu0 %v1123
    %1228 = vmatprep.subr.bf16.mxu0 0
    %1229 = vmatpush2.bf16.msra.mxu0 %v1138
    %1230 = vmatprep.subr.bf16.mxu0 0
    %1231 = vmatpush2.bf16.msra.mxu0 %v1137
    %1232 = vmatprep.subr.bf16.mxu0 0
    %1233 = vmatpush2.bf16.msra.mxu0 %v1136
    %1234 = vmatprep.subr.bf16.mxu0 0
    %1235 = vmatpush2.bf16.msra.mxu0 %v1135
    %1236 = vmatprep.subr.bf16.mxu0 0
    %1237 = vmatpush2.bf16.msra.mxu0 %v1134
    %1238 = vmatprep.subr.bf16.mxu0 0
    %1239 = vmatpush2.bf16.msra.mxu0 %v1133
    %1240 = vmatprep.subr.bf16.mxu0 0
    %1241 = vmatpush2.bf16.msra.mxu0 %v1132
    %1242 = vmatprep.subr.bf16.mxu0 0
    %1243 = vmatpush2.bf16.msra.mxu0 %v1131
    %1244 = vmatprep.mubr.bf16.mxu0 %v910
    %1245 = vmatmul.mubr.bf16.gmra.mxu0 %v909
    %v1246 = vpop.f32.mrf.mxu0
    %v1247 = vadd.f32 %v1206, %v1246
    %v1248 = vpop.f32.mrf.mxu0
    %v1249 = vpop.f32.mrf.mxu0
    %v1250 = vadd.f32 %v1209, %v1249
    %v1251 = vpop.f32.mrf.mxu0
    %1252 = vdwg.mxu0
    %v1253 = vpack.c.bf16 %v1250, %v1247
    %v1255 = vunpack.c.l.b16 %v1253
    %v1256 = vunpack.c.h.b16 %v1253
    %v1257 = vpack.c.b16 %v1255, %v1255
    %v1258 = vpack.c.b16 %v1256, %v1256
    %1261 = vst [vmem:[#allocation10] sm:$0xf] %v1257
    %1262 = vst [vmem:[#allocation10 + $0x4] sm:$0xf] %v1258
    // Predicated region
    $region46: #{tpu_custom_call.1} parent=1 // pred_check
      _
    $region47: #{tpu_custom_call.1} parent=1 // pred_check_branch
      %1264 = sbr.rel (0) target = $region49
    $region48: #{tpu_custom_call.1} parent=1 // pred_region
      %s1266 = ssub.s32 128, 128
      %1267 = vsyncadd [#allocation4], %s1266
      %s1268 = sshll.u32 [#allocation10], 4
      %s1269 = int_to_ptr.vmem [resolvable:$true] %s1268
      %1274 = dma.vmem_to_hbm [thread:$0]  %s1269, 128, %s7, [#allocation4], 64, 64, 4
    $region49: #{tpu_custom_call.1} parent=1 // pred_fallthru
      _
    // Predicated region
    $region50: #{tpu_custom_call.1} parent=1 // pred_check
      _
    $region51: #{tpu_custom_call.1} parent=1 // pred_check_branch
      %1276 = sbr.rel (0) target = $region53
    $region52: #{tpu_custom_call.1} parent=1 // pred_region
      %1277 = dma.done [#allocation4], 128
    $region53: #{tpu_custom_call.1} parent=1 // pred_fallthru
      _
    %1278 = vsyncpa [#allocation3], 1
    %1279 = vsyncpa [#allocation6], 1
    %1280 = vsyncpa [#allocation9], 1
    %1281 = vsyncpa [#allocation4], 1

</llo_original>
